<compile_context>
chip_gen: v6e
topology: v6e:2x2x1
jax: 0.10.0
libtpu: 0.0.40
codegen_flags: <defaults>
</compile_context>

<pallas_src>
import math

import jax
import jax.numpy as jnp
from jax.experimental import pallas as pl
from jax.experimental.pallas import tpu as pltpu


def _round_up(x, m):
    return ((x + m - 1) // m) * m


def _vmem_capacity_bytes():
    try:
        return int(pltpu.get_tpu_info().vmem_capacity_bytes)
    except Exception:
        return 64 * 1024 * 1024  # conservative (v7x-sized) fallback


def lorentz_linear_kernel(params_ref, x_ref, wt_ref, b_ref, o_ref, acc_ref):
    """One (row-tile, k-tile) grid step of LorentzLinear.

    params_ref : SMEM (3,) f32      -> [c, sqrt(c)+0.5, exp(scale)]
    x_ref      : VMEM (tm, tk)      (mm dtype, zero padded)
    wt_ref     : VMEM (tk, out_p)   (W transposed, zero padded, mm dtype)
    b_ref      : VMEM (1, out_p)    f32 (zero padded)
    o_ref      : VMEM (tm, out_p)
    acc_ref    : VMEM (tm, out_p)   f32 accumulator scratch
    """
    k = pl.program_id(1)

    @pl.when(k == 0)
    def _():
        acc_ref[...] = jnp.zeros_like(acc_ref)

    # Hot path: MXU matmul with f32 accumulation.
    acc_ref[...] += jnp.dot(x_ref[...], wt_ref[...],
                            preferred_element_type=jnp.float32)

    @pl.when(k == pl.num_programs(1) - 1)
    def _():
        c = params_ref[0]
        sqrt_c_plus_half = params_ref[1]
        exp_scale = params_ref[2]

        y = acc_ref[...] + b_ref[...]
        out_p = o_ref.shape[-1]
        # (1, out_p) column mask; broadcast over rows (cheaper than a full
        # (tm, out_p) int32 iota).
        is_col0 = jax.lax.broadcasted_iota(jnp.int32, (1, out_p), 1) == 0

        # y0 = y[:, 0:1] via a lane-aligned masked reduce; the space squared
        # norm comes from one unmasked reduce minus y0^2 (padded columns of
        # y are exactly zero, so they contribute nothing).
        y0 = jnp.sum(jnp.where(is_col0, y, 0.0), axis=-1, keepdims=True)
        total = jnp.sum(y * y, axis=-1, keepdims=True)
        # Keep the clamp: it also guards the rare cancellation case where
        # total - y0^2 rounds slightly negative.
        denom = jnp.maximum(total - y0 * y0, 1e-8)

        time = jax.nn.sigmoid(y0) * exp_scale + sqrt_c_plus_half
        s = (time * time - c) / denom
        factor = jnp.sqrt(jnp.maximum(s, 1e-8))

        # Single full-width, lane-dense store (no concatenate on the lane axis).
        o_ref[...] = jnp.where(is_col0, time, y * factor).astype(o_ref.dtype)


def prepare_lorentz_linear_params(weight, bias, c, log_scale, *,
                                  use_bf16_matmul=True):
    """Host-side parameter prep (pad + transpose). Call once at init."""
    out_features, in_features = weight.shape
    mm_dtype = jnp.bfloat16 if use_bf16_matmul else jnp.float32
    in_p = _round_up(in_features, 128)
    out_p = _round_up(out_features, 128)

    wt = weight.T.astype(mm_dtype)
    if (in_p, out_p) != (in_features, out_features):
        wt = jnp.pad(wt, ((0, in_p - in_features), (0, out_p - out_features)))
    b = bias.astype(jnp.float32).reshape(1, out_features)
    if out_p != out_features:
        b = jnp.pad(b, ((0, 0), (0, out_p - out_features)))
    params = jnp.array([c, math.sqrt(c) + 0.5, math.exp(log_scale)],
                       dtype=jnp.float32)
    return dict(wt=wt, b=b, params=params, in_features=in_features,
                out_features=out_features, mm_dtype=mm_dtype)


def lorentz_linear_prepared(x, prep, *, tm=None, tk=None,
                            out_dtype=jnp.float32, x_buffer_count=None):
    """Apply LorentzLinear using pre-padded/transposed parameters."""
    n, in_features = x.shape
    assert in_features == prep["in_features"]
    out_features = prep["out_features"]
    mm_dtype = prep["mm_dtype"]
    wt_p, b_p, params = prep["wt"], prep["b"], prep["params"]
    in_p, out_p = wt_p.shape
    dsz = jnp.dtype(mm_dtype).itemsize
    out_dsz = jnp.dtype(out_dtype).itemsize

    vmem_cap = _vmem_capacity_bytes()

    # ---- K (reduction) tiling: keep the weight fully resident when it fits.
    if tk is None:
        if in_p * out_p * dsz <= vmem_cap // 4:
            tk = in_p
        else:
            tk = 128
            while (in_p % (2 * tk) == 0
                   and 2 * (2 * tk) * out_p * dsz <= vmem_cap // 4):
                tk *= 2
    else:
        tk = min(_round_up(tk, 128), in_p)
        assert in_p % tk == 0, "tk must evenly divide the padded in dim"
    k_grid = in_p // tk

    # ---- Row tiling. ----
    def vmem_estimate(tm_):
        wt_bufs = 1 if k_grid == 1 else 2
        return (2 * tm_ * tk * dsz              # x tiles (double buffered)
                + wt_bufs * tk * out_p * dsz    # W^T tile(s)
                + out_p * 4                     # bias
                + 2 * tm_ * out_p * out_dsz     # output tiles
                + tm_ * out_p * 4               # f32 accumulator scratch
                + 2 * tm_ * out_p * 4)          # epilogue temporaries

    if tm is None:
        tm = 1024 if vmem_cap > (80 << 20) else 512   # v5e/v6e vs v7x
    tm = max(8, min(_round_up(tm, 8), _round_up(n, 8)))
    while tm > 64 and vmem_estimate(tm) > int(0.6 * vmem_cap):
        tm = max(64, _round_up(tm // 2, 8))
    # Guarantee >= 2 row tiles when the batch allows it, so the "parallel"
    # row axis can shard across v7x's two TensorCores.
    if _round_up(n, 8) // tm < 2 and n > 8:
        tm = max(8, _round_up((n + 1) // 2, 8))
    n_p = _round_up(n, tm)
    row_grid = n_p // tm

    # ---- Input: cast, pad only when actually misaligned. ----
    x_p = x.astype(mm_dtype)
    if (n_p, in_p) != (n, in_features):
        x_p = jnp.pad(x_p, ((0, n_p - n), (0, in_p - in_features)))

    est = vmem_estimate(tm)
    vmem_limit = int(min(max(2 * est, 16 * 1024 * 1024),
                         int(0.85 * vmem_cap)))

    def run(single_buffer_resident):
        resident = ({"pipeline_mode": pl.Buffered(1)}
                    if single_buffer_resident else {})
        wt_kwargs = resident if k_grid == 1 else {}
        x_kwargs = ({"pipeline_mode": pl.Buffered(x_buffer_count)}
                    if x_buffer_count is not None else {})
        return pl.pallas_call(
            lorentz_linear_kernel,
            out_shape=jax.ShapeDtypeStruct((n_p, out_p), out_dtype),
            grid=(row_grid, k_grid),
            in_specs=[
                pl.BlockSpec(memory_space=pltpu.MemorySpace.SMEM),        # params
                pl.BlockSpec((tm, tk), lambda i, k: (i, k), **x_kwargs),  # x tile
                pl.BlockSpec((tk, out_p), lambda i, k: (k, 0), **wt_kwargs),
                pl.BlockSpec((1, out_p), lambda i, k: (0, 0), **resident),
            ],
            out_specs=pl.BlockSpec((tm, out_p), lambda i, k: (i, 0)),
            scratch_shapes=[pltpu.VMEM((tm, out_p), jnp.float32)],
            compiler_params=pltpu.CompilerParams(
                dimension_semantics=("parallel", "arbitrary"),
                vmem_limit_bytes=vmem_limit,
            ),
        )(params, x_p, wt_p, b_p)

    try:
        out = run(True)
    except Exception:
        # pipeline_mode / Buffered(1) not supported by this JAX build.
        out = run(False)

    return out[:n, :out_features]


def lorentz_linear(x, weight, bias, c, log_scale, *, use_bf16_matmul=True,
                   **kwargs):
    prep = prepare_lorentz_linear_params(weight, bias, c, log_scale,
                                         use_bf16_matmul=use_bf16_matmul)
    return lorentz_linear_prepared(x, prep, **kwargs)


def lorentz_linear_ref(x, weight, bias, c, log_scale):
    """Pure-JAX reference mirroring the PyTorch forward (eval mode)."""
    y = x @ weight.T + bias
    x_narrow = y[..., 1:]
    time = jax.nn.sigmoid(y[..., 0:1]) * jnp.exp(log_scale) + (jnp.sqrt(c) + 0.5)
    denom = jnp.maximum(
        jnp.sum(x_narrow * x_narrow, axis=-1, keepdims=True), 1e-8)
    s = (time * time - c) / denom
    return jnp.concatenate(
        [time, x_narrow * jnp.sqrt(jnp.maximum(s, 1e-8))], axis=-1)


if __name__ == "__main__":
    key = jax.random.PRNGKey(0)

    def make_layer(k, in_features, out_features):
        # Deterministic init mirroring reset_parameters(): uniform(-stdv, stdv),
        # zero column 0 (step == in_features -> only idx 0), bias = 0.
        stdv = 1.0 / math.sqrt(out_features)
        w = jax.random.uniform(k, (out_features, in_features),
                               minval=-stdv, maxval=stdv, dtype=jnp.float32)
        w = w.at[:, 0].set(0.0)
        b = jnp.zeros((out_features,), dtype=jnp.float32)
        return w, b

    c = 1.0
    log_scale = math.log(10.0)   # self.scale = log(10)

    k1, k2, k3, k4 = jax.random.split(key, 4)

    # ---- Test 1: small layer, default bf16-matmul path, hoisted prep. ----
    in_f, out_f, n = 32, 32, 16
    w1, b1 = make_layer(k1, in_f, out_f)
    x1 = jax.random.normal(k2, (n, in_f), dtype=jnp.float32)
    prep1 = prepare_lorentz_linear_params(w1, b1, c, log_scale)  # bf16 default
    out1 = jax.block_until_ready(lorentz_linear_prepared(x1, prep1))
    ref1 = lorentz_linear_ref(x1, w1, b1, c, log_scale)
    assert out1.shape == (n, out_f)
    err1 = float(jnp.max(jnp.abs(out1 - ref1)))
    assert jnp.allclose(out1, ref1, atol=7e-2, rtol=5e-2), err1

    # ---- Test 2: exact f32 matmul path, tight tolerance. ----
    out2 = jax.block_until_ready(
        lorentz_linear(x1, w1, b1, c, log_scale, use_bf16_matmul=False))
    err2 = float(jnp.max(jnp.abs(out2 - ref1)))
    assert jnp.allclose(out2, ref1, atol=1e-4, rtol=1e-4), err2

    # ---- Test 3: K-tiled reduction path (forced tk=128), f32, tight tol. ----
    in_f3, out_f3, n3 = 256, 64, 64
    w3, b3 = make_layer(k3, in_f3, out_f3)
    x3 = jax.random.normal(k4, (n3, in_f3), dtype=jnp.float32)
    out3 = jax.block_until_ready(
        lorentz_linear(x3, w3, b3, c, log_scale,
                       use_bf16_matmul=False, tk=128))
    ref3 = lorentz_linear_ref(x3, w3, b3, c, log_scale)
    assert out3.shape == (n3, out_f3)
    err3 = float(jnp.max(jnp.abs(out3 - ref3)))
    assert jnp.allclose(out3, ref3, atol=2e-4, rtol=2e-4), err3

    print("KERNEL_OK")
</pallas_src>

<mosaic_0001>
module attributes {stable_mosaic.version = 11 : i64} {
  func.func @lorentz_linear_kernel(%arg0: i32, %arg1: i32, %arg2: memref<3xf32, #tpu.memory_space<smem>>, %arg3: memref<8x128xbf16, #tpu.memory_space<vmem>>, %arg4: memref<128x128xbf16, #tpu.memory_space<vmem>>, %arg5: memref<1x128xf32, #tpu.memory_space<vmem>>, %arg6: memref<8x128xf32, #tpu.memory_space<vmem>>, %arg7: memref<8x128xf32, #tpu.memory_space<vmem>>) attributes {dimension_semantics = [#tpu.dimension_semantics<parallel>, #tpu.dimension_semantics<arbitrary>], iteration_bounds = array<i64: 2, 1>, scalar_prefetch = 0 : i64, scratch_operands = 1 : i64, tpu.core_type = #tpu.core_type<tc>, window_params = [{transform_indices = @transform_0, window_bounds = array<i64: 3>}, {transform_indices = @transform_1, window_bounds = array<i64: 8, 128>}, {pipeline_mode = #tpu.pipeline_mode<synchronous>, transform_indices = @transform_2, window_bounds = array<i64: 128, 128>}, {pipeline_mode = #tpu.pipeline_mode<synchronous>, transform_indices = @transform_3, window_bounds = array<i64: 1, 128>}, {transform_indices = @transform_4, window_bounds = array<i64: 8, 128>}]} {
    %c0_i32 = arith.constant 0 : i32
    %0 = arith.cmpi eq, %arg1, %c0_i32 : i32
    %1 = arith.extui %0 : i1 to i32
    %c0_i32_0 = arith.constant 0 : i32
    %2 = arith.cmpi ne, %1, %c0_i32_0 : i32
    scf.if %2 {
      %cst_10 = arith.constant 0.000000e+00 : f32
      %12 = vector.broadcast %cst_10 : f32 to vector<8x128xf32>
      %c0_11 = arith.constant 0 : index
      %c0_12 = arith.constant 0 : index
      %13 = vector.load %arg7[%c0_11, %c0_12] : memref<8x128xf32, #tpu.memory_space<vmem>>, vector<8x128xf32>
      tpu.vector_store %arg7[%c0_11, %c0_12], %12 {strides = array<i32>} : memref<8x128xf32, #tpu.memory_space<vmem>>, vector<8x128xf32>,
    } else {
    }
    %c0 = arith.constant 0 : index
    %c0_1 = arith.constant 0 : index
    %3 = vector.load %arg7[%c0, %c0_1] : memref<8x128xf32, #tpu.memory_space<vmem>>, vector<8x128xf32>
    %c0_2 = arith.constant 0 : index
    %c0_3 = arith.constant 0 : index
    %4 = vector.load %arg3[%c0_2, %c0_3] : memref<8x128xbf16, #tpu.memory_space<vmem>>, vector<8x128xbf16>
    %c0_4 = arith.constant 0 : index
    %c0_5 = arith.constant 0 : index
    %5 = vector.load %arg4[%c0_4, %c0_5] : memref<128x128xbf16, #tpu.memory_space<vmem>>, vector<128x128xbf16>
    %cst = arith.constant dense<0.000000e+00> : vector<8x128xf32>
    %6 = tpu.matmul %4, %5, %cst {dimension_numbers = #tpu.dot_dimension_numbers<[1], [0], [0], [1], [0, 0, 1, 1], [], []>} : vector<8x128xbf16>, vector<128x128xbf16>, vector<8x128xf32> -> vector<8x128xf32>
    %7 = arith.addf %3, %6 : vector<8x128xf32>
    %c0_6 = arith.constant 0 : index
    %c0_7 = arith.constant 0 : index
    %8 = vector.load %arg7[%c0_6, %c0_7] : memref<8x128xf32, #tpu.memory_space<vmem>>, vector<8x128xf32>
    tpu.vector_store %arg7[%c0_6, %c0_7], %7 {strides = array<i32>} : memref<8x128xf32, #tpu.memory_space<vmem>>, vector<8x128xf32>,
    %c0_i32_8 = arith.constant 0 : i32
    %9 = arith.cmpi eq, %arg1, %c0_i32_8 : i32
    %10 = arith.extui %9 : i1 to i32
    %c0_i32_9 = arith.constant 0 : i32
    %11 = arith.cmpi ne, %10, %c0_i32_9 : i32
    scf.if %11 {
      %c0_10 = arith.constant 0 : index
      %12 = memref.load %arg2[%c0_10] : memref<3xf32, #tpu.memory_space<smem>>
      %c1 = arith.constant 1 : index
      %13 = memref.load %arg2[%c1] : memref<3xf32, #tpu.memory_space<smem>>
      %c2 = arith.constant 2 : index
      %14 = memref.load %arg2[%c2] : memref<3xf32, #tpu.memory_space<smem>>
      %c0_11 = arith.constant 0 : index
      %c0_12 = arith.constant 0 : index
      %15 = vector.load %arg7[%c0_11, %c0_12] : memref<8x128xf32, #tpu.memory_space<vmem>>, vector<8x128xf32>
      %c0_13 = arith.constant 0 : index
      %c0_14 = arith.constant 0 : index
      %16 = vector.load %arg5[%c0_13, %c0_14] : memref<1x128xf32, #tpu.memory_space<vmem>>, vector<1x128xf32>
      %17 = vector.broadcast %16 : vector<1x128xf32> to vector<8x128xf32>
      %18 = arith.addf %15, %17 : vector<8x128xf32>
      %19 = tpu.iota {dimensions = array<i32: 1>} : vector<1x128xi32>
      %c0_i32_15 = arith.constant 0 : i32
      %20 = vector.broadcast %c0_i32_15 : i32 to vector<1x128xi32>
      %21 = arith.cmpi eq, %19, %20 : vector<1x128xi32>
      %cst_16 = arith.constant 0.000000e+00 : f32
      %22 = vector.shape_cast %21 : vector<1x128xi1> to vector<1x128xi1>
      %23 = vector.broadcast %22 : vector<1x128xi1> to vector<8x128xi1>
      %24 = vector.broadcast %cst_16 : f32 to vector<8x128xf32>
      %25 = arith.select %23, %18, %24 : vector<8x128xi1>, vector<8x128xf32>
      %cst_17 = arith.constant dense<0.000000e+00> : vector<8xf32>
      %26 = vector.multi_reduction <add>, %25, %cst_17 [1] : vector<8x128xf32> to vector<8xf32>
      %27 = vector.shape_cast %26 : vector<8xf32> to vector<8x1xf32>
      %28 = arith.mulf %18, %18 : vector<8x128xf32>
      %cst_18 = arith.constant dense<0.000000e+00> : vector<8xf32>
      %29 = vector.multi_reduction <add>, %28, %cst_18 [1] : vector<8x128xf32> to vector<8xf32>
      %30 = vector.shape_cast %29 : vector<8xf32> to vector<8x1xf32>
      %31 = arith.mulf %27, %27 : vector<8x1xf32>
      %32 = arith.subf %30, %31 : vector<8x1xf32>
      %cst_19 = arith.constant 9.99999993E-9 : f32
      %33 = vector.broadcast %cst_19 : f32 to vector<8x1xf32>
      %34 = arith.maximumf %32, %33 : vector<8x1xf32>
      %35 = arith.negf %27 : vector<8x1xf32>
      %36 = math.exp %35 : vector<8x1xf32>
      %cst_20 = arith.constant 1.000000e+00 : f32
      %37 = vector.broadcast %cst_20 : f32 to vector<8x1xf32>
      %38 = arith.addf %37, %36 : vector<8x1xf32>
      %39 = arith.divf %37, %38 : vector<8x1xf32>
      %40 = vector.broadcast %14 : f32 to vector<8x1xf32>
      %41 = arith.mulf %39, %40 : vector<8x1xf32>
      %42 = vector.broadcast %13 : f32 to vector<8x1xf32>
      %43 = arith.addf %41, %42 : vector<8x1xf32>
      %44 = arith.mulf %43, %43 : vector<8x1xf32>
      %45 = vector.broadcast %12 : f32 to vector<8x1xf32>
      %46 = arith.subf %44, %45 : vector<8x1xf32>
      %47 = arith.divf %46, %34 : vector<8x1xf32>
      %cst_21 = arith.constant 9.99999993E-9 : f32
      %48 = vector.broadcast %cst_21 : f32 to vector<8x1xf32>
      %49 = arith.maximumf %47, %48 : vector<8x1xf32>
      %50 = math.sqrt %49 : vector<8x1xf32>
      %51 = vector.broadcast %50 : vector<8x1xf32> to vector<8x128xf32>
      %52 = arith.mulf %18, %51 : vector<8x128xf32>
      %53 = vector.shape_cast %21 : vector<1x128xi1> to vector<1x128xi1>
      %54 = vector.broadcast %53 : vector<1x128xi1> to vector<8x128xi1>
      %55 = vector.shape_cast %43 : vector<8x1xf32> to vector<8x1xf32>
      %56 = vector.broadcast %55 : vector<8x1xf32> to vector<8x128xf32>
      %57 = arith.select %54, %56, %52 : vector<8x128xi1>, vector<8x128xf32>
      %c0_22 = arith.constant 0 : index
      %c0_23 = arith.constant 0 : index
      %58 = vector.load %arg6[%c0_22, %c0_23] : memref<8x128xf32, #tpu.memory_space<vmem>>, vector<8x128xf32>
      tpu.vector_store %arg6[%c0_22, %c0_23], %57 {strides = array<i32>} : memref<8x128xf32, #tpu.memory_space<vmem>>, vector<8x128xf32>,
    } else {
    }
    return
  }
  func.func @transform_0(%arg0: i32, %arg1: i32) -> i32 {
    %c0_i32 = arith.constant 0 : i32
    %c0_i32_0 = arith.constant 0 : i32
    return %c0_i32 : i32
  }
  func.func @transform_1(%arg0: i32, %arg1: i32) -> (i32, i32) {
    %c0_i32 = arith.constant 0 : i32
    return %arg0, %arg1 : i32, i32
  }
  func.func @transform_2(%arg0: i32, %arg1: i32) -> (i32, i32) {
    %c0_i32 = arith.constant 0 : i32
    %c0_i32_0 = arith.constant 0 : i32
    return %arg1, %c0_i32 : i32, i32
  }
  func.func @transform_3(%arg0: i32, %arg1: i32) -> (i32, i32) {
    %c0_i32 = arith.constant 0 : i32
    %c0_i32_0 = arith.constant 0 : i32
    %c0_i32_1 = arith.constant 0 : i32
    return %c0_i32, %c0_i32_0 : i32, i32
  }
  func.func @transform_4(%arg0: i32, %arg1: i32) -> (i32, i32) {
    %c0_i32 = arith.constant 0 : i32
    %c0_i32_0 = arith.constant 0 : i32
    return %arg0, %c0_i32 : i32, i32
  }
}

module attributes {stable_mosaic.version = 11 : i64} {
  func.func @lorentz_linear_kernel(%arg0: i32, %arg1: i32, %arg2: memref<3xf32, #tpu.memory_space<smem>>, %arg3: memref<8x128xbf16, #tpu.memory_space<vmem>>, %arg4: memref<128x128xbf16, #tpu.memory_space<vmem>>, %arg5: memref<1x128xf32, #tpu.memory_space<vmem>>, %arg6: memref<8x128xf32, #tpu.memory_space<vmem>>, %arg7: memref<8x128xf32, #tpu.memory_space<vmem>>) attributes {dimension_semantics = [#tpu.dimension_semantics<parallel>, #tpu.dimension_semantics<arbitrary>], iteration_bounds = array<i64: 2, 1>, scalar_prefetch = 0 : i64, scratch_operands = 1 : i64, tpu.core_type = #tpu.core_type<tc>, window_params = [{transform_indices = @transform_0, window_bounds = array<i64: 3>}, {transform_indices = @transform_1, window_bounds = array<i64: 8, 128>}, {transform_indices = @transform_2, window_bounds = array<i64: 128, 128>}, {pipeline_mode = #tpu.pipeline_mode<synchronous>, transform_indices = @transform_3, window_bounds = array<i64: 1, 128>}, {transform_indices = @transform_4, window_bounds = array<i64: 8, 128>}]} {
    %c0_i32 = arith.constant 0 : i32
    %0 = arith.cmpi eq, %arg1, %c0_i32 : i32
    %1 = arith.extui %0 : i1 to i32
    %c0_i32_0 = arith.constant 0 : i32
    %2 = arith.cmpi ne, %1, %c0_i32_0 : i32
    scf.if %2 {
      %cst_10 = arith.constant 0.000000e+00 : f32
      %12 = vector.broadcast %cst_10 : f32 to vector<8x128xf32>
      %c0_11 = arith.constant 0 : index
      %c0_12 = arith.constant 0 : index
      %13 = vector.load %arg7[%c0_11, %c0_12] : memref<8x128xf32, #tpu.memory_space<vmem>>, vector<8x128xf32>
      tpu.vector_store %arg7[%c0_11, %c0_12], %12 {strides = array<i32>} : memref<8x128xf32, #tpu.memory_space<vmem>>, vector<8x128xf32>,
    } else {
    }
    %c0 = arith.constant 0 : index
    %c0_1 = arith.constant 0 : index
    %3 = vector.load %arg7[%c0, %c0_1] : memref<8x128xf32, #tpu.memory_space<vmem>>, vector<8x128xf32>
    %c0_2 = arith.constant 0 : index
    %c0_3 = arith.constant 0 : index
    %4 = vector.load %arg3[%c0_2, %c0_3] : memref<8x128xbf16, #tpu.memory_space<vmem>>, vector<8x128xbf16>
    %c0_4 = arith.constant 0 : index
    %c0_5 = arith.constant 0 : index
    %5 = vector.load %arg4[%c0_4, %c0_5] : memref<128x128xbf16, #tpu.memory_space<vmem>>, vector<128x128xbf16>
    %cst = arith.constant dense<0.000000e+00> : vector<8x128xf32>
    %6 = tpu.matmul %4, %5, %cst {dimension_numbers = #tpu.dot_dimension_numbers<[1], [0], [0], [1], [0, 0, 1, 1], [], []>} : vector<8x128xbf16>, vector<128x128xbf16>, vector<8x128xf32> -> vector<8x128xf32>
    %7 = arith.addf %3, %6 : vector<8x128xf32>
    %c0_6 = arith.constant 0 : index
    %c0_7 = arith.constant 0 : index
    %8 = vector.load %arg7[%c0_6, %c0_7] : memref<8x128xf32, #tpu.memory_space<vmem>>, vector<8x128xf32>
    tpu.vector_store %arg7[%c0_6, %c0_7], %7 {strides = array<i32>} : memref<8x128xf32, #tpu.memory_space<vmem>>, vector<8x128xf32>,
    %c0_i32_8 = arith.constant 0 : i32
    %9 = arith.cmpi eq, %arg1, %c0_i32_8 : i32
    %10 = arith.extui %9 : i1 to i32
    %c0_i32_9 = arith.constant 0 : i32
    %11 = arith.cmpi ne, %10, %c0_i32_9 : i32
    scf.if %11 {
      %c0_10 = arith.constant 0 : index
      %12 = memref.load %arg2[%c0_10] : memref<3xf32, #tpu.memory_space<smem>>
      %c1 = arith.constant 1 : index
      %13 = memref.load %arg2[%c1] : memref<3xf32, #tpu.memory_space<smem>>
      %c2 = arith.constant 2 : index
      %14 = memref.load %arg2[%c2] : memref<3xf32, #tpu.memory_space<smem>>
      %c0_11 = arith.constant 0 : index
      %c0_12 = arith.constant 0 : index
      %15 = vector.load %arg7[%c0_11, %c0_12] : memref<8x128xf32, #tpu.memory_space<vmem>>, vector<8x128xf32>
      %c0_13 = arith.constant 0 : index
      %c0_14 = arith.constant 0 : index
      %16 = vector.load %arg5[%c0_13, %c0_14] : memref<1x128xf32, #tpu.memory_space<vmem>>, vector<1x128xf32>
      %17 = vector.broadcast %16 : vector<1x128xf32> to vector<8x128xf32>
      %18 = arith.addf %15, %17 : vector<8x128xf32>
      %19 = tpu.iota {dimensions = array<i32: 1>} : vector<1x128xi32>
      %c0_i32_15 = arith.constant 0 : i32
      %20 = vector.broadcast %c0_i32_15 : i32 to vector<1x128xi32>
      %21 = arith.cmpi eq, %19, %20 : vector<1x128xi32>
      %cst_16 = arith.constant 0.000000e+00 : f32
      %22 = vector.shape_cast %21 : vector<1x128xi1> to vector<1x128xi1>
      %23 = vector.broadcast %22 : vector<1x128xi1> to vector<8x128xi1>
      %24 = vector.broadcast %cst_16 : f32 to vector<8x128xf32>
      %25 = arith.select %23, %18, %24 : vector<8x128xi1>, vector<8x128xf32>
      %cst_17 = arith.constant dense<0.000000e+00> : vector<8xf32>
      %26 = vector.multi_reduction <add>, %25, %cst_17 [1] : vector<8x128xf32> to vector<8xf32>
      %27 = vector.shape_cast %26 : vector<8xf32> to vector<8x1xf32>
      %28 = arith.mulf %18, %18 : vector<8x128xf32>
      %cst_18 = arith.constant dense<0.000000e+00> : vector<8xf32>
      %29 = vector.multi_reduction <add>, %28, %cst_18 [1] : vector<8x128xf32> to vector<8xf32>
      %30 = vector.shape_cast %29 : vector<8xf32> to vector<8x1xf32>
      %31 = arith.mulf %27, %27 : vector<8x1xf32>
      %32 = arith.subf %30, %31 : vector<8x1xf32>
      %cst_19 = arith.constant 9.99999993E-9 : f32
      %33 = vector.broadcast %cst_19 : f32 to vector<8x1xf32>
      %34 = arith.maximumf %32, %33 : vector<8x1xf32>
      %35 = arith.negf %27 : vector<8x1xf32>
      %36 = math.exp %35 : vector<8x1xf32>
      %cst_20 = arith.constant 1.000000e+00 : f32
      %37 = vector.broadcast %cst_20 : f32 to vector<8x1xf32>
      %38 = arith.addf %37, %36 : vector<8x1xf32>
      %39 = arith.divf %37, %38 : vector<8x1xf32>
      %40 = vector.broadcast %14 : f32 to vector<8x1xf32>
      %41 = arith.mulf %39, %40 : vector<8x1xf32>
      %42 = vector.broadcast %13 : f32 to vector<8x1xf32>
      %43 = arith.addf %41, %42 : vector<8x1xf32>
      %44 = arith.mulf %43, %43 : vector<8x1xf32>
      %45 = vector.broadcast %12 : f32 to vector<8x1xf32>
      %46 = arith.subf %44, %45 : vector<8x1xf32>
      %47 = arith.divf %46, %34 : vector<8x1xf32>
      %cst_21 = arith.constant 9.99999993E-9 : f32
      %48 = vector.broadcast %cst_21 : f32 to vector<8x1xf32>
      %49 = arith.maximumf %47, %48 : vector<8x1xf32>
      %50 = math.sqrt %49 : vector<8x1xf32>
      %51 = vector.broadcast %50 : vector<8x1xf32> to vector<8x128xf32>
      %52 = arith.mulf %18, %51 : vector<8x128xf32>
      %53 = vector.shape_cast %21 : vector<1x128xi1> to vector<1x128xi1>
      %54 = vector.broadcast %53 : vector<1x128xi1> to vector<8x128xi1>
      %55 = vector.shape_cast %43 : vector<8x1xf32> to vector<8x1xf32>
      %56 = vector.broadcast %55 : vector<8x1xf32> to vector<8x128xf32>
      %57 = arith.select %54, %56, %52 : vector<8x128xi1>, vector<8x128xf32>
      %c0_22 = arith.constant 0 : index
      %c0_23 = arith.constant 0 : index
      %58 = vector.load %arg6[%c0_22, %c0_23] : memref<8x128xf32, #tpu.memory_space<vmem>>, vector<8x128xf32>
      tpu.vector_store %arg6[%c0_22, %c0_23], %57 {strides = array<i32>} : memref<8x128xf32, #tpu.memory_space<vmem>>, vector<8x128xf32>,
    } else {
    }
    return
  }
  func.func @transform_0(%arg0: i32, %arg1: i32) -> i32 {
    %c0_i32 = arith.constant 0 : i32
    %c0_i32_0 = arith.constant 0 : i32
    return %c0_i32 : i32
  }
  func.func @transform_1(%arg0: i32, %arg1: i32) -> (i32, i32) {
    %c0_i32 = arith.constant 0 : i32
    return %arg0, %arg1 : i32, i32
  }
  func.func @transform_2(%arg0: i32, %arg1: i32) -> (i32, i32) {
    %c0_i32 = arith.constant 0 : i32
    %c0_i32_0 = arith.constant 0 : i32
    return %arg1, %c0_i32 : i32, i32
  }
  func.func @transform_3(%arg0: i32, %arg1: i32) -> (i32, i32) {
    %c0_i32 = arith.constant 0 : i32
    %c0_i32_0 = arith.constant 0 : i32
    %c0_i32_1 = arith.constant 0 : i32
    return %c0_i32, %c0_i32_0 : i32, i32
  }
  func.func @transform_4(%arg0: i32, %arg1: i32) -> (i32, i32) {
    %c0_i32 = arith.constant 0 : i32
    %c0_i32_0 = arith.constant 0 : i32
    return %arg0, %c0_i32 : i32, i32
  }
}

</mosaic_0001>

<llo_original>
// kernel: tpu_custom_call.1
$region0: #{tpu_custom_call.1}
  #allocation0 [shape = 'u32[]', space=smem, size = 0x4, offset = 0x4, fixed_abs, tag = 'smem constant byte address 0x4 - core index']
  #allocation1 [shape = 'u32[144,128]{1,0:T(1,128)}', space=vmem, size = 0x12000, scoped, tag = 'internal scratch']
  #allocation2 [shape = 'f32[8,128]{1,0:T(8,128)}', space=vmem, size = 0x1000, scoped, tag = 'scratch operand']
  %s0 = inlined_call_operand.hbm [shape: f32[3], index: 0, kind: input, shape index: {}]
  %s1 = inlined_call_operand.hbm [shape: bf16[16,128], index: 1, kind: input, shape index: {}]
  %s2 = inlined_call_operand.hbm [shape: bf16[128,128], index: 2, kind: input, shape index: {}]
  %s3 = inlined_call_operand.vmem [shape: f32[1,128], index: 3, kind: input, shape index: {}]
  %s4 = inlined_call_operand.hbm [shape: f32[16,128], index: 4, kind: output, shape index: {}]
  %s5 = sld [smem:[#allocation0]]
  $region69: #{tpu_custom_call.1} parent=0
    _
  %s7 = ssub.s32 1, %s5
  %s8 = scalar_select 0, %s7, %s5
  $region1: #{tpu_custom_call.1} parent=0
    #allocation3 [shape = 'u8[512]{0}', space=smem, size = 0x200, scoped, tag = 'input window, operand 0, single buffered']
    #allocation4 [shape = 's32[2]{0}', space=sflag, size = 0x8, scoped, tag = 'scoped memory for tpu_custom_call.1']
    #allocation5 [shape = 's32[2]{0}', space=sflag, size = 0x8, scoped, tag = 'scoped memory for tpu_custom_call.1']
    #allocation6 [shape = 's32[2]{0}', space=sflag, size = 0x8, scoped, tag = 'scoped memory for tpu_custom_call.1']
    #allocation7 [shape = 'u8[4096]{0}', space=vmem, size = 0x1000, scoped, tag = 'input window, operand 1']
    #allocation8 [shape = 'u8[32768]{0}', space=vmem, size = 0x8000, scoped, tag = 'input window, operand 2, single buffered']
    #allocation9 [shape = 's32[1]{0}', space=sflag, size = 0x4, scoped, tag = 'scoped memory for tpu_custom_call.1']
    #allocation10 [shape = 'u8[8192]{0}', space=vmem, size = 0x2000, scoped, tag = 'output window, operand 0']
    %9 = vsyncpa [#allocation6], 0
    %10 = vsyncpa [#allocation4], 0
    %s11 = scalar_lea.sflag [#allocation4], 1
    %12 = vsyncpa %s11, 0
    %13 = vsyncpa [#allocation9], 0
    %14 = vsyncpa [#allocation5], 0
    %s15 = scalar_lea.sflag [#allocation5], 1
    %16 = vsyncpa %s15, 0
    loop: start=0, step=1, limit=4
    $region2: #{tpu_custom_call.1} parent=1 // loop_pre_header
      _
    $region3: #{tpu_custom_call.1} parent=1 // loop_header
      %s18 = sphi 0, %s22
      %p19 = scmp.ge.s32.totalorder %s18, 4
      %s25 = sphi 0, %s37
      %s26 = sphi 0, %s33
      %s27 = sphi 0, %s25
      %s28 = sphi 0, %s26
      %s29 = sphi 0, %s27
      %s30 = sphi 0, %s28
      %s38 = sphi 0, %s38
      %s40 = sphi 0, %s38
      %s41 = sphi 0, %s40
      %s55 = sphi 0, %s41
      %s63 = sphi 0, %s65
      %s66 = sphi 0, %s63
      %s67 = sphi 0, %s66
      %s83 = sphi 0, %s67
      %s89 = sphi 0, %s91
      %s92 = sphi 0, %s89
      %s93 = sphi 0, %s92
      %s109 = sphi 0, %s93
      %s113 = sphi 0, %s113
      %s115 = sphi 0, %s113
      %s116 = sphi 0, %s115
      %s130 = sphi 0, %s116
      %s136 = sphi 0, %s138
      %s139 = sphi 0, %s136
      %s140 = sphi 0, %s139
      %s156 = sphi 0, %s140
    $region4: #{tpu_custom_call.1} parent=1 // loop_header_branch
      %21 = sbr.rel (%p19) target = $region8
    $region5: #{tpu_custom_call.1} parent=1 // loop_body
      %s23 = ssub.s32 %s18, 1
      %s24 = ssub.s32 %s18, 2
      %s31 = sadd.s32 1, %s26
      %p32 = scmp.ge.s32.totalorder %s31, 1
      %s33 = scalar_select %p32, 0, %s31
      %s34 = sadd.s32 1, %s25
      %s35 = scalar_select %p32, %s34, %s25
      %p36 = scmp.ge.s32.totalorder %s35, 2
      %s37 = scalar_select %p36, 0, %s35
      %s39 = sadd.s32 %s38, 1
      %p42 = scmp.eq.s32.totalorder %s18, 1
      %p43 = scmp.ne.s32.totalorder %s38, %s40
      %p44 = scmp.eq.s32.totalorder %s18, 0
      %p45 = por %p43, %p44
      %p46 = scmp.ne.s32.totalorder %s38, %s40
      %p47 = scmp.eq.s32.totalorder %s23, 1
      %p48 = por %p46, %p47
      %p49 = scmp.ne.s32.totalorder %s40, %s41
      %p50 = scmp.eq.s32.totalorder %s23, 0
      %p51 = por %p49, %p50
      %p52 = scmp.ne.s32.totalorder %s40, %s41
      %p53 = scmp.eq.s32.totalorder %s24, 1
      %p54 = por %p52, %p53
      %p56 = scmp.ne.s32.totalorder %s41, %s55
      %p57 = scmp.eq.s32.totalorder %s24, 0
      %p58 = por %p56, %p57
      %s59 = ssub.s32 %s25, %s37
      %s60 = ssub.s32 %s26, %s33
      %s61 = sor.u32 %s59, %s60
      %p62 = scmp.eq.s32.totalorder %s61, 0
      %s64 = sadd.s32 %s63, 1
      %s65 = scalar_select %p62, %s63, %s64
      %p68 = pneg %p62
      %p69 = scmp.eq.s32.totalorder %s18, 1
      %p70 = por %p68, %p69
      %p71 = scmp.ne.s32.totalorder %s63, %s66
      %p72 = scmp.eq.s32.totalorder %s18, 0
      %p73 = por %p71, %p72
      %p74 = scmp.ne.s32.totalorder %s63, %s66
      %p75 = scmp.eq.s32.totalorder %s23, 1
      %p76 = por %p74, %p75
      %p77 = scmp.ne.s32.totalorder %s66, %s67
      %p78 = scmp.eq.s32.totalorder %s23, 0
      %p79 = por %p77, %p78
      %p80 = scmp.ne.s32.totalorder %s66, %s67
      %p81 = scmp.eq.s32.totalorder %s24, 1
      %p82 = por %p80, %p81
      %p84 = scmp.ne.s32.totalorder %s67, %s83
      %p85 = scmp.eq.s32.totalorder %s24, 0
      %p86 = por %p84, %p85
      %s87 = ssub.s32 %s26, %s33
      %p88 = scmp.eq.s32.totalorder %s87, 0
      %s90 = sadd.s32 %s89, 1
      %s91 = scalar_select %p88, %s89, %s90
      %p94 = pneg %p88
      %p95 = scmp.eq.s32.totalorder %s18, 1
      %p96 = por %p94, %p95
      %p97 = scmp.ne.s32.totalorder %s89, %s92
      %p98 = scmp.eq.s32.totalorder %s18, 0
      %p99 = por %p97, %p98
      %p100 = scmp.ne.s32.totalorder %s89, %s92
      %p101 = scmp.eq.s32.totalorder %s23, 1
      %p102 = por %p100, %p101
      %p103 = scmp.ne.s32.totalorder %s92, %s93
      %p104 = scmp.eq.s32.totalorder %s23, 0
      %p105 = por %p103, %p104
      %p106 = scmp.ne.s32.totalorder %s92, %s93
      %p107 = scmp.eq.s32.totalorder %s24, 1
      %p108 = por %p106, %p107
      %p110 = scmp.ne.s32.totalorder %s93, %s109
      %p111 = scmp.eq.s32.totalorder %s24, 0
      %p112 = por %p110, %p111
      %s114 = sadd.s32 %s113, 1
      %p117 = scmp.eq.s32.totalorder %s18, 1
      %p118 = scmp.ne.s32.totalorder %s113, %s115
      %p119 = scmp.eq.s32.totalorder %s18, 0
      %p120 = por %p118, %p119
      %p121 = scmp.ne.s32.totalorder %s113, %s115
      %p122 = scmp.eq.s32.totalorder %s23, 1
      %p123 = por %p121, %p122
      %p124 = scmp.ne.s32.totalorder %s115, %s116
      %p125 = scmp.eq.s32.totalorder %s23, 0
      %p126 = por %p124, %p125
      %p127 = scmp.ne.s32.totalorder %s115, %s116
      %p128 = scmp.eq.s32.totalorder %s24, 1
      %p129 = por %p127, %p128
      %p131 = scmp.ne.s32.totalorder %s116, %s130
      %p132 = scmp.eq.s32.totalorder %s24, 0
      %p133 = por %p131, %p132
      %s134 = ssub.s32 %s25, %s37
      %p135 = scmp.eq.s32.totalorder %s134, 0
      %s137 = sadd.s32 %s136, 1
      %s138 = scalar_select %p135, %s136, %s137
      %p141 = pneg %p135
      %p142 = scmp.eq.s32.totalorder %s18, 1
      %p143 = por %p141, %p142
      %p144 = scmp.ne.s32.totalorder %s136, %s139
      %p145 = scmp.eq.s32.totalorder %s18, 0
      %p146 = por %p144, %p145
      %p147 = scmp.ne.s32.totalorder %s136, %s139
      %p148 = scmp.eq.s32.totalorder %s23, 1
      %p149 = por %p147, %p148
      %p150 = scmp.ne.s32.totalorder %s139, %s140
      %p151 = scmp.eq.s32.totalorder %s23, 0
      %p152 = por %p150, %p151
      %p153 = scmp.ne.s32.totalorder %s139, %s140
      %p154 = scmp.eq.s32.totalorder %s24, 1
      %p155 = por %p153, %p154
      %p157 = scmp.ne.s32.totalorder %s140, %s156
      %p158 = scmp.eq.s32.totalorder %s24, 0
      %p159 = por %p157, %p158
      %p160 = scmp.le.s32.totalorder 1, %s18
      %p161 = scmp.lt.s32.totalorder %s18, 3
      %p162 = pnand %p160, %p161
      %p163 = pneg %p162
      // Predicated region
      $region9: #{tpu_custom_call.1} parent=5 // pred_check
        _
      $region10: #{tpu_custom_call.1} parent=5 // pred_check_branch
        %165 = sbr.rel (%p162) target = $region12
      $region11: #{tpu_custom_call.1} parent=5 // pred_region
        %s166 = ssub.s32 %s18, 1
        // Predicated region
        $region13: #{tpu_custom_call.1} parent=11 // pred_check
          %p167 = pneg %p51
        $region14: #{tpu_custom_call.1} parent=11 // pred_check_branch
          %169 = sbr.rel (%p167) target = $region16
        $region15: #{tpu_custom_call.1} parent=11 // pred_region
          %s171 = ssub.s32 16, 16
          %172 = vsyncadd [#allocation6], %s171
          %175 = dma.hbm_to_smem %s0, 16, [#allocation3], [#allocation6]
        $region16: #{tpu_custom_call.1} parent=11 // pred_fallthru
          _
        // Predicated region
        $region17: #{tpu_custom_call.1} parent=11 // pred_check
          %p176 = pneg %p105
        $region18: #{tpu_custom_call.1} parent=11 // pred_check_branch
          %178 = sbr.rel (%p176) target = $region20
        $region19: #{tpu_custom_call.1} parent=11 // pred_region
          %s179 = smul.u32 16, %s28
          %s181 = ssub.s32 1024, 1024
          %182 = vsyncadd [#allocation9], %s181
          %s183 = smul.addr %s179, 64
          %s184 = scalar_lea.hbm %s2, %s183
          %s185 = sshll.u32 [#allocation8], 4
          %s186 = int_to_ptr.vmem [resolvable:$true] %s185
          %191 = dma.hbm_to_vmem [thread:$0]  %s184, 1024, %s186, [#allocation9], 64, 64, 4
        $region20: #{tpu_custom_call.1} parent=11 // pred_fallthru
          _
        // Predicated region
        $region21: #{tpu_custom_call.1} parent=11 // pred_check
          %p192 = pneg %p126
        $region22: #{tpu_custom_call.1} parent=11 // pred_check_branch
          %194 = sbr.rel (%p192) target = $region24
        $region23: #{tpu_custom_call.1} parent=11 // pred_region
          _
        $region24: #{tpu_custom_call.1} parent=11 // pred_fallthru
          _
      $region12: #{tpu_custom_call.1} parent=5 // pred_fallthru
        _
      %p195 = scmp.lt.s32.totalorder %s18, 2
      // Predicated region
      $region25: #{tpu_custom_call.1} parent=5 // pred_check
        %p196 = pneg %p195
      $region26: #{tpu_custom_call.1} parent=5 // pred_check_branch
        %198 = sbr.rel (%p196) target = $region28
      $region27: #{tpu_custom_call.1} parent=5 // pred_region
        // Predicated region
        $region29: #{tpu_custom_call.1} parent=27 // pred_check
          %p199 = pneg %p73
        $region30: #{tpu_custom_call.1} parent=27 // pred_check_branch
          %201 = sbr.rel (%p199) target = $region32
        $region31: #{tpu_custom_call.1} parent=27 // pred_region
          %s202 = sand.u32 %s63, 1
          %s203 = scalar_lea.sflag [#allocation4], %s202
          %s204 = sand.u32 %s63, 1
          %s205 = smul.addr %s204, 4
          %s206 = scalar_lea.vmem [#allocation7], %s205
          %s208 = ssub.s32 64, 64
          %209 = vsyncadd %s203, %s208
          %s210 = sadd.s32 %s26, %s25
          %s211 = smul.addr %s210, 64
          %s212 = scalar_lea.hbm %s1, %s211
          %s214 = sshll.u32 %s206, 4
          %s215 = int_to_ptr.vmem [resolvable:$true] %s214
          %217 = dma.hbm_to_vmem [thread:$0]  %s212, 64, %s215, %s203
        $region32: #{tpu_custom_call.1} parent=27 // pred_fallthru
          _
      $region28: #{tpu_custom_call.1} parent=5 // pred_fallthru
        _
      %p218 = scmp.le.s32.totalorder 1, %s18
      %p219 = scmp.lt.s32.totalorder %s18, 3
      %p220 = pnand %p218, %p219
      %p221 = pneg %p220
      // Predicated region
      $region33: #{tpu_custom_call.1} parent=5 // pred_check
        _
      $region34: #{tpu_custom_call.1} parent=5 // pred_check_branch
        %223 = sbr.rel (%p220) target = $region36
      $region35: #{tpu_custom_call.1} parent=5 // pred_region
        %s224 = ssub.s32 %s18, 1
        // Predicated region
        $region37: #{tpu_custom_call.1} parent=35 // pred_check
          %p225 = pneg %p51
        $region38: #{tpu_custom_call.1} parent=35 // pred_check_branch
          %227 = sbr.rel (%p225) target = $region40
        $region39: #{tpu_custom_call.1} parent=35 // pred_region
          %228 = dma.done [#allocation6], 16
        $region40: #{tpu_custom_call.1} parent=35 // pred_fallthru
          _
        %s229 = sand.u32 %s66, 1
        %s230 = scalar_lea.sflag [#allocation4], %s229
        %s231 = sand.u32 %s66, 1
        %s232 = smul.addr %s231, 4
        %s233 = scalar_lea.vmem [#allocation7], %s232
        // Predicated region
        $region41: #{tpu_custom_call.1} parent=35 // pred_check
          %p234 = pneg %p79
        $region42: #{tpu_custom_call.1} parent=35 // pred_check_branch
          %236 = sbr.rel (%p234) target = $region44
        $region43: #{tpu_custom_call.1} parent=35 // pred_region
          %237 = dma.done %s230, 64
        $region44: #{tpu_custom_call.1} parent=35 // pred_fallthru
          _
        // Predicated region
        $region45: #{tpu_custom_call.1} parent=35 // pred_check
          %p238 = pneg %p105
        $region46: #{tpu_custom_call.1} parent=35 // pred_check_branch
          %240 = sbr.rel (%p238) target = $region48
        $region47: #{tpu_custom_call.1} parent=35 // pred_region
          %241 = dma.done [#allocation9], 1024
        $region48: #{tpu_custom_call.1} parent=35 // pred_fallthru
          _
        %242 = sfence
        %p243 = pneg %p51
        %p244 = pneg %p48
        %s245 = sand.u32 %s66, 1
        %s246 = scalar_lea.sflag [#allocation4], %s245
        %s247 = sand.u32 %s66, 1
        %s248 = smul.addr %s247, 4
        %s249 = scalar_lea.vmem [#allocation7], %s248
        %p250 = pneg %p79
        %p251 = pneg %p76
        %p252 = pneg %p105
        %p253 = pneg %p102
        %p254 = pneg %p126
        %p255 = pneg %p123
        %p256 = pneg %p152
        %p257 = pneg %p149
        %s258 = sand.u32 %s139, 1
        %s259 = scalar_lea.sflag [#allocation5], %s258
        %s260 = sand.u32 %s139, 1
        %s261 = smul.addr %s260, 8
        %s262 = scalar_lea.vmem [#allocation10], %s261
        %s263 = smul.u32 16, %s28
        %p265 = scmp.eq.s32.totalorder %s28, 0
        // Predicated region
        $region49: #{tpu_custom_call.1} parent=35 // pred_check
          %p266 = pneg %p265
        $region50: #{tpu_custom_call.1} parent=35 // pred_check_branch
          %268 = sbr.rel (%p266) target = $region52
        $region51: #{tpu_custom_call.1} parent=35 // pred_region
          %269 = vst [vmem:[#allocation2] sm:$0xff] 0.0
        $region52: #{tpu_custom_call.1} parent=35 // pred_fallthru
          _
        %v270 = vld [vmem:[#allocation2] sm:$0xff]
        %v271 = vld [vmem:[%s233] sm:$0xf]
        %v272 = vld [vmem:[#allocation8] sm:$0xf]
        %v273 = vld [vmem:[#allocation8 + $0x4] sm:$0xf]
        %v274 = vld [vmem:[#allocation8 + $0x8] sm:$0xf]
        %v275 = vld [vmem:[#allocation8 + $0xc] sm:$0xf]
        %v276 = vld [vmem:[#allocation8 + $0x10] sm:$0xf]
        %v277 = vld [vmem:[#allocation8 + $0x14] sm:$0xf]
        %v278 = vld [vmem:[#allocation8 + $0x18] sm:$0xf]
        %v279 = vld [vmem:[#allocation8 + $0x1c] sm:$0xf]
        %v280 = vld [vmem:[#allocation8 + $0x20] sm:$0xf]
        %v281 = vld [vmem:[#allocation8 + $0x24] sm:$0xf]
        %v282 = vld [vmem:[#allocation8 + $0x28] sm:$0xf]
        %v283 = vld [vmem:[#allocation8 + $0x2c] sm:$0xf]
        %v284 = vld [vmem:[#allocation8 + $0x30] sm:$0xf]
        %v285 = vld [vmem:[#allocation8 + $0x34] sm:$0xf]
        %v286 = vld [vmem:[#allocation8 + $0x38] sm:$0xf]
        %v287 = vld [vmem:[#allocation8 + $0x3c] sm:$0xf]
        %v304 = vunpack.c.l.b16 %v272
        %v305 = vunpack.c.l.b16 %v273
        %v306 = vunpack.c.l.b16 %v274
        %v307 = vunpack.c.l.b16 %v275
        %v308 = vunpack.c.l.b16 %v276
        %v309 = vunpack.c.l.b16 %v277
        %v310 = vunpack.c.l.b16 %v278
        %v311 = vunpack.c.l.b16 %v279
        %v312 = vunpack.c.l.b16 %v280
        %v313 = vunpack.c.l.b16 %v281
        %v314 = vunpack.c.l.b16 %v282
        %v315 = vunpack.c.l.b16 %v283
        %v316 = vunpack.c.l.b16 %v284
        %v317 = vunpack.c.l.b16 %v285
        %v318 = vunpack.c.l.b16 %v286
        %v319 = vunpack.c.l.b16 %v287
        %v320 = vpack.c.b16 %v305, %v304
        %v321 = vpack.c.b16 %v307, %v306
        %v322 = vpack.c.b16 %v309, %v308
        %v323 = vpack.c.b16 %v311, %v310
        %v324 = vpack.c.b16 %v313, %v312
        %v325 = vpack.c.b16 %v315, %v314
        %v326 = vpack.c.b16 %v317, %v316
        %v327 = vpack.c.b16 %v319, %v318
        %336 = vmatprep.subr.bf16.mxu0 0
        %337 = vmatpush1.bf16.msra.mxu0 %v327
        %338 = vmatprep.subr.bf16.mxu0 0
        %339 = vmatpush1.bf16.msra.mxu0 %v326
        %340 = vmatprep.subr.bf16.mxu0 0
        %341 = vmatpush1.bf16.msra.mxu0 %v325
        %342 = vmatprep.subr.bf16.mxu0 0
        %343 = vmatpush1.bf16.msra.mxu0 %v324
        %344 = vmatprep.subr.bf16.mxu0 0
        %345 = vmatpush1.bf16.msra.mxu0 %v323
        %346 = vmatprep.subr.bf16.mxu0 0
        %347 = vmatpush1.bf16.msra.mxu0 %v322
        %348 = vmatprep.subr.bf16.mxu0 0
        %349 = vmatpush1.bf16.msra.mxu0 %v321
        %350 = vmatprep.subr.bf16.mxu0 0
        %351 = vmatpush1.bf16.msra.mxu0 %v320
        %352 = vmatprep.subr.bf16.mxu0 0
        %353 = vmatpush2.bf16.msra.mxu0 0
        %354 = vmatprep.subr.bf16.mxu0 0
        %355 = vmatpush2.bf16.msra.mxu0 0
        %356 = vmatprep.subr.bf16.mxu0 0
        %357 = vmatpush2.bf16.msra.mxu0 0
        %358 = vmatprep.subr.bf16.mxu0 0
        %359 = vmatpush2.bf16.msra.mxu0 0
        %360 = vmatprep.subr.bf16.mxu0 0
        %361 = vmatpush2.bf16.msra.mxu0 0
        %362 = vmatprep.subr.bf16.mxu0 0
        %363 = vmatpush2.bf16.msra.mxu0 0
        %364 = vmatprep.subr.bf16.mxu0 0
        %365 = vmatpush2.bf16.msra.mxu0 0
        %366 = vmatprep.subr.bf16.mxu0 0
        %367 = vmatpush2.bf16.msra.mxu0 0
        %368 = vmatprep.mubr.bf16.mxu0 0
        %369 = vmatmul.mubr.bf16.gmra.mxu0 %v271
        %v370 = vpop.f32.mrf.mxu0
        %v371 = vadd.f32 0.0, %v370
        %v372 = vpop.f32.mrf.mxu0
        %v373 = vpop.f32.mrf.mxu0
        %v374 = vpop.f32.mrf.mxu0
        %375 = vdwg.mxu0
        %v376 = vadd.f32 %v270, %v371
        %377 = vst [vmem:[#allocation2] sm:$0xff] %v376
        // Predicated region
        $region53: #{tpu_custom_call.1} parent=35 // pred_check
          %p378 = pneg %p265
        $region54: #{tpu_custom_call.1} parent=35 // pred_check_branch
          %380 = sbr.rel (%p378) target = $region56
        $region55: #{tpu_custom_call.1} parent=35 // pred_region
          %s381 = sld [smem:[#allocation3]]
          %s382 = sld [smem:[#allocation3 + $0x1]]
          %s383 = sld [smem:[#allocation3 + $0x2]]
          %v384 = vld [vmem:[#allocation2] sm:$0xff]
          %v385 = vld [vmem:[%s3] sm:$0x1]
          %v387 = vlaneseq
          %v388 = vshrl.u32 %v387, 7
          %v389 = vsub.s32 0, %v388
          %v390 = vrot.slane %v385, %v389
          %v392 = vadd.f32 %v384, %v390
          %v393 = vlaneseq
          %v394 = vand.u32 %v393, 127
          %vm395 = vcmp.eq.s32.totalorder %v394, 0
          %v396 = vsel %vm395, 1, 0
          %vm397 = vcmp.eq.s32.totalorder %v396, 1
          %v398 = vsel %vm397, %v392, 0.0
          %399 = vadd.xlane.f32.xlu0 %v398
          %v400 = vpop.xlane.xlu0 %399
          %v401 = vmul.f32 %v392, %v392
          %402 = vadd.xlane.f32.xlu0 %v401
          %v403 = vpop.xlane.xlu0 %402
          %v404 = vmul.f32 %v400, %v400
          %v405 = vsub.f32 %v403, %v404
          %v406 = vmax.f32 %v405, 1e-08
          %v407 = vxor.u32 %v400, 2147483648
          %v408 = vmul.f32 %v407, 1.442695
          %v409 = vpow.pop %v408
          %v410 = vadd.f32 %v409, 1.0
          %v411 = vrcp.pop %v410
          %v412 = vmul.f32 1.0, %v411
          %v413 = vstv %s383
          %v414 = vmul.f32 %v412, %v413
          %v415 = vstv %s382
          %v416 = vadd.f32 %v414, %v415
          %v417 = vmul.f32 %v416, %v416
          %v418 = vstv %s381
          %v419 = vsub.f32 %v417, %v418
          %v420 = vrcp.pop %v406
          %v421 = vmul.f32 %v419, %v420
          %v422 = vmax.f32 %v421, 1e-08
          %v423 = vrsqrt.pop %v422
          %v424 = vmul.f32 %v422, %v423
          %vm425 = vcmp.eq.f32.partialorder %v422, inf
          %v426 = vsel %vm425, %v422, %v424
          %vm427 = vcmp.eq.f32.partialorder %v422, 0.0
          %v428 = vand.u32 %v422, 2147483648
          %v429 = vsel %vm427, %v428, %v426
          %v430 = vmul.f32 %v392, %v429
          %v431 = vsel %vm397, %v416, %v430
          %432 = vst [vmem:[%s262] sm:$0xff] %v431
        $region56: #{tpu_custom_call.1} parent=35 // pred_fallthru
          _
        %s433 = sand.u32 %s139, 1
        %s434 = scalar_lea.sflag [#allocation5], %s433
        %s435 = sand.u32 %s139, 1
        %s436 = smul.addr %s435, 8
        %s437 = scalar_lea.vmem [#allocation10], %s436
        // Predicated region
        $region57: #{tpu_custom_call.1} parent=35 // pred_check
          %p438 = pneg %p149
        $region58: #{tpu_custom_call.1} parent=35 // pred_check_branch
          %440 = sbr.rel (%p438) target = $region60
        $region59: #{tpu_custom_call.1} parent=35 // pred_region
          %s442 = ssub.s32 128, 128
          %443 = vsyncadd %s434, %s442
          %s444 = smul.addr %s27, 128
          %s445 = scalar_lea.hbm %s4, %s444
          %s447 = sshll.u32 %s437, 4
          %s448 = int_to_ptr.vmem [resolvable:$true] %s447
          %450 = dma.vmem_to_hbm [thread:$0]  %s448, 128, %s445, %s434
        $region60: #{tpu_custom_call.1} parent=35 // pred_fallthru
          _
      $region36: #{tpu_custom_call.1} parent=5 // pred_fallthru
        _
      %p451 = scmp.le.s32.totalorder 2, %s18
      // Predicated region
      $region61: #{tpu_custom_call.1} parent=5 // pred_check
        %p452 = pneg %p451
      $region62: #{tpu_custom_call.1} parent=5 // pred_check_branch
        %454 = sbr.rel (%p452) target = $region64
      $region63: #{tpu_custom_call.1} parent=5 // pred_region
        %s455 = ssub.s32 %s18, 2
        // Predicated region
        $region65: #{tpu_custom_call.1} parent=63 // pred_check
          %p456 = pneg %p155
        $region66: #{tpu_custom_call.1} parent=63 // pred_check_branch
          %458 = sbr.rel (%p456) target = $region68
        $region67: #{tpu_custom_call.1} parent=63 // pred_region
          %s459 = sand.u32 %s140, 1
          %s460 = scalar_lea.sflag [#allocation5], %s459
          %s461 = sand.u32 %s140, 1
          %s462 = smul.addr %s461, 8
          %s463 = scalar_lea.vmem [#allocation10], %s462
          %464 = dma.done %s460, 128
        $region68: #{tpu_custom_call.1} parent=63 // pred_fallthru
          _
      $region64: #{tpu_custom_call.1} parent=5 // pred_fallthru
        _
    $region6: #{tpu_custom_call.1} parent=1 // loop_footer
      %s22 = sadd.s32 1, %s18
    $region7: #{tpu_custom_call.1} parent=1 // loop_footer_branch
      %17 = sbr.rel target = $region3
    $region8: #{tpu_custom_call.1} parent=1 // loop_exit
      _
    %465 = vsyncpa [#allocation4], 1
    %s466 = scalar_lea.sflag [#allocation4], 1
    %467 = vsyncpa %s466, 1
    %468 = vsyncpa [#allocation9], 1
    %469 = vsyncpa [#allocation5], 1
    %s470 = scalar_lea.sflag [#allocation5], 1
    %471 = vsyncpa %s470, 1
    %472 = vsyncpa [#allocation6], 1
    %s473 = scalar_lea.sflag [#allocation6], 1
    %474 = vsyncpa %s473, 1

// kernel: tpu_custom_call.1
$region0: #{tpu_custom_call.1}
  #allocation0 [shape = 'u32[]', space=smem, size = 0x4, offset = 0x4, fixed_abs, tag = 'smem constant byte address 0x4 - core index']
  #allocation1 [shape = 'u32[144,128]{1,0:T(1,128)}', space=vmem, size = 0x12000, scoped, tag = 'internal scratch']
  #allocation2 [shape = 'f32[8,128]{1,0:T(8,128)}', space=vmem, size = 0x1000, scoped, tag = 'scratch operand']
  %s0 = inlined_call_operand.hbm [shape: f32[3], index: 0, kind: input, shape index: {}]
  %s1 = inlined_call_operand.hbm [shape: bf16[16,128], index: 1, kind: input, shape index: {}]
  %s2 = inlined_call_operand.hbm [shape: bf16[128,128], index: 2, kind: input, shape index: {}]
  %s3 = inlined_call_operand.vmem [shape: f32[1,128], index: 3, kind: input, shape index: {}]
  %s4 = inlined_call_operand.hbm [shape: f32[16,128], index: 4, kind: output, shape index: {}]
  %s5 = sld [smem:[#allocation0]]
  $region69: #{tpu_custom_call.1} parent=0
    _
  %s7 = ssub.s32 1, %s5
  %s8 = scalar_select 0, %s7, %s5
  $region1: #{tpu_custom_call.1} parent=0
    #allocation3 [shape = 'u8[512]{0}', space=smem, size = 0x200, scoped, tag = 'input window, operand 0, single buffered']
    #allocation4 [shape = 's32[2]{0}', space=sflag, size = 0x8, scoped, tag = 'scoped memory for tpu_custom_call.1']
    #allocation5 [shape = 's32[2]{0}', space=sflag, size = 0x8, scoped, tag = 'scoped memory for tpu_custom_call.1']
    #allocation6 [shape = 's32[2]{0}', space=sflag, size = 0x8, scoped, tag = 'scoped memory for tpu_custom_call.1']
    #allocation7 [shape = 'u8[4096]{0}', space=vmem, size = 0x1000, scoped, tag = 'input window, operand 1']
    #allocation8 [shape = 'u8[32768]{0}', space=vmem, size = 0x8000, scoped, tag = 'input window, operand 2, single buffered']
    #allocation9 [shape = 's32[1]{0}', space=sflag, size = 0x4, scoped, tag = 'scoped memory for tpu_custom_call.1']
    #allocation10 [shape = 'u8[8192]{0}', space=vmem, size = 0x2000, scoped, tag = 'output window, operand 0']
    %9 = vsyncpa [#allocation6], 0
    %10 = vsyncpa [#allocation4], 0
    %s11 = scalar_lea.sflag [#allocation4], 1
    %12 = vsyncpa %s11, 0
    %13 = vsyncpa [#allocation9], 0
    %14 = vsyncpa [#allocation5], 0
    %s15 = scalar_lea.sflag [#allocation5], 1
    %16 = vsyncpa %s15, 0
    loop: start=0, step=1, limit=4
    $region2: #{tpu_custom_call.1} parent=1 // loop_pre_header
      _
    $region3: #{tpu_custom_call.1} parent=1 // loop_header
      %s18 = sphi 0, %s22
      %p19 = scmp.ge.s32.totalorder %s18, 4
      %s25 = sphi 0, %s37
      %s26 = sphi 0, %s33
      %s27 = sphi 0, %s25
      %s28 = sphi 0, %s26
      %s29 = sphi 0, %s27
      %s30 = sphi 0, %s28
      %s38 = sphi 0, %s38
      %s40 = sphi 0, %s38
      %s41 = sphi 0, %s40
      %s55 = sphi 0, %s41
      %s63 = sphi 0, %s65
      %s66 = sphi 0, %s63
      %s67 = sphi 0, %s66
      %s83 = sphi 0, %s67
      %s89 = sphi 0, %s91
      %s92 = sphi 0, %s89
      %s93 = sphi 0, %s92
      %s109 = sphi 0, %s93
      %s113 = sphi 0, %s113
      %s115 = sphi 0, %s113
      %s116 = sphi 0, %s115
      %s130 = sphi 0, %s116
      %s136 = sphi 0, %s138
      %s139 = sphi 0, %s136
      %s140 = sphi 0, %s139
      %s156 = sphi 0, %s140
    $region4: #{tpu_custom_call.1} parent=1 // loop_header_branch
      %21 = sbr.rel (%p19) target = $region8
    $region5: #{tpu_custom_call.1} parent=1 // loop_body
      %s23 = ssub.s32 %s18, 1
      %s24 = ssub.s32 %s18, 2
      %s31 = sadd.s32 1, %s26
      %p32 = scmp.ge.s32.totalorder %s31, 1
      %s33 = scalar_select %p32, 0, %s31
      %s34 = sadd.s32 1, %s25
      %s35 = scalar_select %p32, %s34, %s25
      %p36 = scmp.ge.s32.totalorder %s35, 2
      %s37 = scalar_select %p36, 0, %s35
      %s39 = sadd.s32 %s38, 1
      %p42 = scmp.eq.s32.totalorder %s18, 1
      %p43 = scmp.ne.s32.totalorder %s38, %s40
      %p44 = scmp.eq.s32.totalorder %s18, 0
      %p45 = por %p43, %p44
      %p46 = scmp.ne.s32.totalorder %s38, %s40
      %p47 = scmp.eq.s32.totalorder %s23, 1
      %p48 = por %p46, %p47
      %p49 = scmp.ne.s32.totalorder %s40, %s41
      %p50 = scmp.eq.s32.totalorder %s23, 0
      %p51 = por %p49, %p50
      %p52 = scmp.ne.s32.totalorder %s40, %s41
      %p53 = scmp.eq.s32.totalorder %s24, 1
      %p54 = por %p52, %p53
      %p56 = scmp.ne.s32.totalorder %s41, %s55
      %p57 = scmp.eq.s32.totalorder %s24, 0
      %p58 = por %p56, %p57
      %s59 = ssub.s32 %s25, %s37
      %s60 = ssub.s32 %s26, %s33
      %s61 = sor.u32 %s59, %s60
      %p62 = scmp.eq.s32.totalorder %s61, 0
      %s64 = sadd.s32 %s63, 1
      %s65 = scalar_select %p62, %s63, %s64
      %p68 = pneg %p62
      %p69 = scmp.eq.s32.totalorder %s18, 1
      %p70 = por %p68, %p69
      %p71 = scmp.ne.s32.totalorder %s63, %s66
      %p72 = scmp.eq.s32.totalorder %s18, 0
      %p73 = por %p71, %p72
      %p74 = scmp.ne.s32.totalorder %s63, %s66
      %p75 = scmp.eq.s32.totalorder %s23, 1
      %p76 = por %p74, %p75
      %p77 = scmp.ne.s32.totalorder %s66, %s67
      %p78 = scmp.eq.s32.totalorder %s23, 0
      %p79 = por %p77, %p78
      %p80 = scmp.ne.s32.totalorder %s66, %s67
      %p81 = scmp.eq.s32.totalorder %s24, 1
      %p82 = por %p80, %p81
      %p84 = scmp.ne.s32.totalorder %s67, %s83
      %p85 = scmp.eq.s32.totalorder %s24, 0
      %p86 = por %p84, %p85
      %s87 = ssub.s32 %s26, %s33
      %p88 = scmp.eq.s32.totalorder %s87, 0
      %s90 = sadd.s32 %s89, 1
      %s91 = scalar_select %p88, %s89, %s90
      %p94 = pneg %p88
      %p95 = scmp.eq.s32.totalorder %s18, 1
      %p96 = por %p94, %p95
      %p97 = scmp.ne.s32.totalorder %s89, %s92
      %p98 = scmp.eq.s32.totalorder %s18, 0
      %p99 = por %p97, %p98
      %p100 = scmp.ne.s32.totalorder %s89, %s92
      %p101 = scmp.eq.s32.totalorder %s23, 1
      %p102 = por %p100, %p101
      %p103 = scmp.ne.s32.totalorder %s92, %s93
      %p104 = scmp.eq.s32.totalorder %s23, 0
      %p105 = por %p103, %p104
      %p106 = scmp.ne.s32.totalorder %s92, %s93
      %p107 = scmp.eq.s32.totalorder %s24, 1
      %p108 = por %p106, %p107
      %p110 = scmp.ne.s32.totalorder %s93, %s109
      %p111 = scmp.eq.s32.totalorder %s24, 0
      %p112 = por %p110, %p111
      %s114 = sadd.s32 %s113, 1
      %p117 = scmp.eq.s32.totalorder %s18, 1
      %p118 = scmp.ne.s32.totalorder %s113, %s115
      %p119 = scmp.eq.s32.totalorder %s18, 0
      %p120 = por %p118, %p119
      %p121 = scmp.ne.s32.totalorder %s113, %s115
      %p122 = scmp.eq.s32.totalorder %s23, 1
      %p123 = por %p121, %p122
      %p124 = scmp.ne.s32.totalorder %s115, %s116
      %p125 = scmp.eq.s32.totalorder %s23, 0
      %p126 = por %p124, %p125
      %p127 = scmp.ne.s32.totalorder %s115, %s116
      %p128 = scmp.eq.s32.totalorder %s24, 1
      %p129 = por %p127, %p128
      %p131 = scmp.ne.s32.totalorder %s116, %s130
      %p132 = scmp.eq.s32.totalorder %s24, 0
      %p133 = por %p131, %p132
      %s134 = ssub.s32 %s25, %s37
      %p135 = scmp.eq.s32.totalorder %s134, 0
      %s137 = sadd.s32 %s136, 1
      %s138 = scalar_select %p135, %s136, %s137
      %p141 = pneg %p135
      %p142 = scmp.eq.s32.totalorder %s18, 1
      %p143 = por %p141, %p142
      %p144 = scmp.ne.s32.totalorder %s136, %s139
      %p145 = scmp.eq.s32.totalorder %s18, 0
      %p146 = por %p144, %p145
      %p147 = scmp.ne.s32.totalorder %s136, %s139
      %p148 = scmp.eq.s32.totalorder %s23, 1
      %p149 = por %p147, %p148
      %p150 = scmp.ne.s32.totalorder %s139, %s140
      %p151 = scmp.eq.s32.totalorder %s23, 0
      %p152 = por %p150, %p151
      %p153 = scmp.ne.s32.totalorder %s139, %s140
      %p154 = scmp.eq.s32.totalorder %s24, 1
      %p155 = por %p153, %p154
      %p157 = scmp.ne.s32.totalorder %s140, %s156
      %p158 = scmp.eq.s32.totalorder %s24, 0
      %p159 = por %p157, %p158
      %p160 = scmp.le.s32.totalorder 1, %s18
      %p161 = scmp.lt.s32.totalorder %s18, 3
      %p162 = pnand %p160, %p161
      %p163 = pneg %p162
      // Predicated region
      $region9: #{tpu_custom_call.1} parent=5 // pred_check
        _
      $region10: #{tpu_custom_call.1} parent=5 // pred_check_branch
        %165 = sbr.rel (%p162) target = $region12
      $region11: #{tpu_custom_call.1} parent=5 // pred_region
        %s166 = ssub.s32 %s18, 1
        // Predicated region
        $region13: #{tpu_custom_call.1} parent=11 // pred_check
          %p167 = pneg %p51
        $region14: #{tpu_custom_call.1} parent=11 // pred_check_branch
          %169 = sbr.rel (%p167) target = $region16
        $region15: #{tpu_custom_call.1} parent=11 // pred_region
          %s171 = ssub.s32 16, 16
          %172 = vsyncadd [#allocation6], %s171
          %175 = dma.hbm_to_smem %s0, 16, [#allocation3], [#allocation6]
        $region16: #{tpu_custom_call.1} parent=11 // pred_fallthru
          _
        // Predicated region
        $region17: #{tpu_custom_call.1} parent=11 // pred_check
          %p176 = pneg %p105
        $region18: #{tpu_custom_call.1} parent=11 // pred_check_branch
          %178 = sbr.rel (%p176) target = $region20
        $region19: #{tpu_custom_call.1} parent=11 // pred_region
          %s179 = smul.u32 16, %s28
          %s181 = ssub.s32 1024, 1024
          %182 = vsyncadd [#allocation9], %s181
          %s183 = smul.addr %s179, 64
          %s184 = scalar_lea.hbm %s2, %s183
          %s185 = sshll.u32 [#allocation8], 4
          %s186 = int_to_ptr.vmem [resolvable:$true] %s185
          %191 = dma.hbm_to_vmem [thread:$0]  %s184, 1024, %s186, [#allocation9], 64, 64, 4
        $region20: #{tpu_custom_call.1} parent=11 // pred_fallthru
          _
        // Predicated region
        $region21: #{tpu_custom_call.1} parent=11 // pred_check
          %p192 = pneg %p126
        $region22: #{tpu_custom_call.1} parent=11 // pred_check_branch
          %194 = sbr.rel (%p192) target = $region24
        $region23: #{tpu_custom_call.1} parent=11 // pred_region
          _
        $region24: #{tpu_custom_call.1} parent=11 // pred_fallthru
          _
      $region12: #{tpu_custom_call.1} parent=5 // pred_fallthru
        _
      %p195 = scmp.lt.s32.totalorder %s18, 2
      // Predicated region
      $region25: #{tpu_custom_call.1} parent=5 // pred_check
        %p196 = pneg %p195
      $region26: #{tpu_custom_call.1} parent=5 // pred_check_branch
        %198 = sbr.rel (%p196) target = $region28
      $region27: #{tpu_custom_call.1} parent=5 // pred_region
        // Predicated region
        $region29: #{tpu_custom_call.1} parent=27 // pred_check
          %p199 = pneg %p73
        $region30: #{tpu_custom_call.1} parent=27 // pred_check_branch
          %201 = sbr.rel (%p199) target = $region32
        $region31: #{tpu_custom_call.1} parent=27 // pred_region
          %s202 = sand.u32 %s63, 1
          %s203 = scalar_lea.sflag [#allocation4], %s202
          %s204 = sand.u32 %s63, 1
          %s205 = smul.addr %s204, 4
          %s206 = scalar_lea.vmem [#allocation7], %s205
          %s208 = ssub.s32 64, 64
          %209 = vsyncadd %s203, %s208
          %s210 = sadd.s32 %s26, %s25
          %s211 = smul.addr %s210, 64
          %s212 = scalar_lea.hbm %s1, %s211
          %s214 = sshll.u32 %s206, 4
          %s215 = int_to_ptr.vmem [resolvable:$true] %s214
          %217 = dma.hbm_to_vmem [thread:$0]  %s212, 64, %s215, %s203
        $region32: #{tpu_custom_call.1} parent=27 // pred_fallthru
          _
      $region28: #{tpu_custom_call.1} parent=5 // pred_fallthru
        _
      %p218 = scmp.le.s32.totalorder 1, %s18
      %p219 = scmp.lt.s32.totalorder %s18, 3
      %p220 = pnand %p218, %p219
      %p221 = pneg %p220
      // Predicated region
      $region33: #{tpu_custom_call.1} parent=5 // pred_check
        _
      $region34: #{tpu_custom_call.1} parent=5 // pred_check_branch
        %223 = sbr.rel (%p220) target = $region36
      $region35: #{tpu_custom_call.1} parent=5 // pred_region
        %s224 = ssub.s32 %s18, 1
        // Predicated region
        $region37: #{tpu_custom_call.1} parent=35 // pred_check
          %p225 = pneg %p51
        $region38: #{tpu_custom_call.1} parent=35 // pred_check_branch
          %227 = sbr.rel (%p225) target = $region40
        $region39: #{tpu_custom_call.1} parent=35 // pred_region
          %228 = dma.done [#allocation6], 16
        $region40: #{tpu_custom_call.1} parent=35 // pred_fallthru
          _
        %s229 = sand.u32 %s66, 1
        %s230 = scalar_lea.sflag [#allocation4], %s229
        %s231 = sand.u32 %s66, 1
        %s232 = smul.addr %s231, 4
        %s233 = scalar_lea.vmem [#allocation7], %s232
        // Predicated region
        $region41: #{tpu_custom_call.1} parent=35 // pred_check
          %p234 = pneg %p79
        $region42: #{tpu_custom_call.1} parent=35 // pred_check_branch
          %236 = sbr.rel (%p234) target = $region44
        $region43: #{tpu_custom_call.1} parent=35 // pred_region
          %237 = dma.done %s230, 64
        $region44: #{tpu_custom_call.1} parent=35 // pred_fallthru
          _
        // Predicated region
        $region45: #{tpu_custom_call.1} parent=35 // pred_check
          %p238 = pneg %p105
        $region46: #{tpu_custom_call.1} parent=35 // pred_check_branch
          %240 = sbr.rel (%p238) target = $region48
        $region47: #{tpu_custom_call.1} parent=35 // pred_region
          %241 = dma.done [#allocation9], 1024
        $region48: #{tpu_custom_call.1} parent=35 // pred_fallthru
          _
        %242 = sfence
        %p243 = pneg %p51
        %p244 = pneg %p48
        %s245 = sand.u32 %s66, 1
        %s246 = scalar_lea.sflag [#allocation4], %s245
        %s247 = sand.u32 %s66, 1
        %s248 = smul.addr %s247, 4
        %s249 = scalar_lea.vmem [#allocation7], %s248
        %p250 = pneg %p79
        %p251 = pneg %p76
        %p252 = pneg %p105
        %p253 = pneg %p102
        %p254 = pneg %p126
        %p255 = pneg %p123
        %p256 = pneg %p152
        %p257 = pneg %p149
        %s258 = sand.u32 %s139, 1
        %s259 = scalar_lea.sflag [#allocation5], %s258
        %s260 = sand.u32 %s139, 1
        %s261 = smul.addr %s260, 8
        %s262 = scalar_lea.vmem [#allocation10], %s261
        %s263 = smul.u32 16, %s28
        %p265 = scmp.eq.s32.totalorder %s28, 0
        // Predicated region
        $region49: #{tpu_custom_call.1} parent=35 // pred_check
          %p266 = pneg %p265
        $region50: #{tpu_custom_call.1} parent=35 // pred_check_branch
          %268 = sbr.rel (%p266) target = $region52
        $region51: #{tpu_custom_call.1} parent=35 // pred_region
          %269 = vst [vmem:[#allocation2] sm:$0xff] 0.0
        $region52: #{tpu_custom_call.1} parent=35 // pred_fallthru
          _
        %v270 = vld [vmem:[#allocation2] sm:$0xff]
        %v271 = vld [vmem:[%s233] sm:$0xf]
        %v272 = vld [vmem:[#allocation8] sm:$0xf]
        %v273 = vld [vmem:[#allocation8 + $0x4] sm:$0xf]
        %v274 = vld [vmem:[#allocation8 + $0x8] sm:$0xf]
        %v275 = vld [vmem:[#allocation8 + $0xc] sm:$0xf]
        %v276 = vld [vmem:[#allocation8 + $0x10] sm:$0xf]
        %v277 = vld [vmem:[#allocation8 + $0x14] sm:$0xf]
        %v278 = vld [vmem:[#allocation8 + $0x18] sm:$0xf]
        %v279 = vld [vmem:[#allocation8 + $0x1c] sm:$0xf]
        %v280 = vld [vmem:[#allocation8 + $0x20] sm:$0xf]
        %v281 = vld [vmem:[#allocation8 + $0x24] sm:$0xf]
        %v282 = vld [vmem:[#allocation8 + $0x28] sm:$0xf]
        %v283 = vld [vmem:[#allocation8 + $0x2c] sm:$0xf]
        %v284 = vld [vmem:[#allocation8 + $0x30] sm:$0xf]
        %v285 = vld [vmem:[#allocation8 + $0x34] sm:$0xf]
        %v286 = vld [vmem:[#allocation8 + $0x38] sm:$0xf]
        %v287 = vld [vmem:[#allocation8 + $0x3c] sm:$0xf]
        %v304 = vunpack.c.l.b16 %v272
        %v305 = vunpack.c.l.b16 %v273
        %v306 = vunpack.c.l.b16 %v274
        %v307 = vunpack.c.l.b16 %v275
        %v308 = vunpack.c.l.b16 %v276
        %v309 = vunpack.c.l.b16 %v277
        %v310 = vunpack.c.l.b16 %v278
        %v311 = vunpack.c.l.b16 %v279
        %v312 = vunpack.c.l.b16 %v280
        %v313 = vunpack.c.l.b16 %v281
        %v314 = vunpack.c.l.b16 %v282
        %v315 = vunpack.c.l.b16 %v283
        %v316 = vunpack.c.l.b16 %v284
        %v317 = vunpack.c.l.b16 %v285
        %v318 = vunpack.c.l.b16 %v286
        %v319 = vunpack.c.l.b16 %v287
        %v320 = vpack.c.b16 %v305, %v304
        %v321 = vpack.c.b16 %v307, %v306
        %v322 = vpack.c.b16 %v309, %v308
        %v323 = vpack.c.b16 %v311, %v310
        %v324 = vpack.c.b16 %v313, %v312
        %v325 = vpack.c.b16 %v315, %v314
        %v326 = vpack.c.b16 %v317, %v316
        %v327 = vpack.c.b16 %v319, %v318
        %336 = vmatprep.subr.bf16.mxu0 0
        %337 = vmatpush1.bf16.msra.mxu0 %v327
        %338 = vmatprep.subr.bf16.mxu0 0
        %339 = vmatpush1.bf16.msra.mxu0 %v326
        %340 = vmatprep.subr.bf16.mxu0 0
        %341 = vmatpush1.bf16.msra.mxu0 %v325
        %342 = vmatprep.subr.bf16.mxu0 0
        %343 = vmatpush1.bf16.msra.mxu0 %v324
        %344 = vmatprep.subr.bf16.mxu0 0
        %345 = vmatpush1.bf16.msra.mxu0 %v323
        %346 = vmatprep.subr.bf16.mxu0 0
        %347 = vmatpush1.bf16.msra.mxu0 %v322
        %348 = vmatprep.subr.bf16.mxu0 0
        %349 = vmatpush1.bf16.msra.mxu0 %v321
        %350 = vmatprep.subr.bf16.mxu0 0
        %351 = vmatpush1.bf16.msra.mxu0 %v320
        %352 = vmatprep.subr.bf16.mxu0 0
        %353 = vmatpush2.bf16.msra.mxu0 0
        %354 = vmatprep.subr.bf16.mxu0 0
        %355 = vmatpush2.bf16.msra.mxu0 0
        %356 = vmatprep.subr.bf16.mxu0 0
        %357 = vmatpush2.bf16.msra.mxu0 0
        %358 = vmatprep.subr.bf16.mxu0 0
        %359 = vmatpush2.bf16.msra.mxu0 0
        %360 = vmatprep.subr.bf16.mxu0 0
        %361 = vmatpush2.bf16.msra.mxu0 0
        %362 = vmatprep.subr.bf16.mxu0 0
        %363 = vmatpush2.bf16.msra.mxu0 0
        %364 = vmatprep.subr.bf16.mxu0 0
        %365 = vmatpush2.bf16.msra.mxu0 0
        %366 = vmatprep.subr.bf16.mxu0 0
        %367 = vmatpush2.bf16.msra.mxu0 0
        %368 = vmatprep.mubr.bf16.mxu0 0
        %369 = vmatmul.mubr.bf16.gmra.mxu0 %v271
        %v370 = vpop.f32.mrf.mxu0
        %v371 = vadd.f32 0.0, %v370
        %v372 = vpop.f32.mrf.mxu0
        %v373 = vpop.f32.mrf.mxu0
        %v374 = vpop.f32.mrf.mxu0
        %375 = vdwg.mxu0
        %v376 = vadd.f32 %v270, %v371
        %377 = vst [vmem:[#allocation2] sm:$0xff] %v376
        // Predicated region
        $region53: #{tpu_custom_call.1} parent=35 // pred_check
          %p378 = pneg %p265
        $region54: #{tpu_custom_call.1} parent=35 // pred_check_branch
          %380 = sbr.rel (%p378) target = $region56
        $region55: #{tpu_custom_call.1} parent=35 // pred_region
          %s381 = sld [smem:[#allocation3]]
          %s382 = sld [smem:[#allocation3 + $0x1]]
          %s383 = sld [smem:[#allocation3 + $0x2]]
          %v384 = vld [vmem:[#allocation2] sm:$0xff]
          %v385 = vld [vmem:[%s3] sm:$0x1]
          %v387 = vlaneseq
          %v388 = vshrl.u32 %v387, 7
          %v389 = vsub.s32 0, %v388
          %v390 = vrot.slane %v385, %v389
          %v392 = vadd.f32 %v384, %v390
          %v393 = vlaneseq
          %v394 = vand.u32 %v393, 127
          %vm395 = vcmp.eq.s32.totalorder %v394, 0
          %v396 = vsel %vm395, 1, 0
          %vm397 = vcmp.eq.s32.totalorder %v396, 1
          %v398 = vsel %vm397, %v392, 0.0
          %399 = vadd.xlane.f32.xlu0 %v398
          %v400 = vpop.xlane.xlu0 %399
          %v401 = vmul.f32 %v392, %v392
          %402 = vadd.xlane.f32.xlu0 %v401
          %v403 = vpop.xlane.xlu0 %402
          %v404 = vmul.f32 %v400, %v400
          %v405 = vsub.f32 %v403, %v404
          %v406 = vmax.f32 %v405, 1e-08
          %v407 = vxor.u32 %v400, 2147483648
          %v408 = vmul.f32 %v407, 1.442695
          %v409 = vpow.pop %v408
          %v410 = vadd.f32 %v409, 1.0
          %v411 = vrcp.pop %v410
          %v412 = vmul.f32 1.0, %v411
          %v413 = vstv %s383
          %v414 = vmul.f32 %v412, %v413
          %v415 = vstv %s382
          %v416 = vadd.f32 %v414, %v415
          %v417 = vmul.f32 %v416, %v416
          %v418 = vstv %s381
          %v419 = vsub.f32 %v417, %v418
          %v420 = vrcp.pop %v406
          %v421 = vmul.f32 %v419, %v420
          %v422 = vmax.f32 %v421, 1e-08
          %v423 = vrsqrt.pop %v422
          %v424 = vmul.f32 %v422, %v423
          %vm425 = vcmp.eq.f32.partialorder %v422, inf
          %v426 = vsel %vm425, %v422, %v424
          %vm427 = vcmp.eq.f32.partialorder %v422, 0.0
          %v428 = vand.u32 %v422, 2147483648
          %v429 = vsel %vm427, %v428, %v426
          %v430 = vmul.f32 %v392, %v429
          %v431 = vsel %vm397, %v416, %v430
          %432 = vst [vmem:[%s262] sm:$0xff] %v431
        $region56: #{tpu_custom_call.1} parent=35 // pred_fallthru
          _
        %s433 = sand.u32 %s139, 1
        %s434 = scalar_lea.sflag [#allocation5], %s433
        %s435 = sand.u32 %s139, 1
        %s436 = smul.addr %s435, 8
        %s437 = scalar_lea.vmem [#allocation10], %s436
        // Predicated region
        $region57: #{tpu_custom_call.1} parent=35 // pred_check
          %p438 = pneg %p149
        $region58: #{tpu_custom_call.1} parent=35 // pred_check_branch
          %440 = sbr.rel (%p438) target = $region60
        $region59: #{tpu_custom_call.1} parent=35 // pred_region
          %s442 = ssub.s32 128, 128
          %443 = vsyncadd %s434, %s442
          %s444 = smul.addr %s27, 128
          %s445 = scalar_lea.hbm %s4, %s444
          %s447 = sshll.u32 %s437, 4
          %s448 = int_to_ptr.vmem [resolvable:$true] %s447
          %450 = dma.vmem_to_hbm [thread:$0]  %s448, 128, %s445, %s434
        $region60: #{tpu_custom_call.1} parent=35 // pred_fallthru
          _
      $region36: #{tpu_custom_call.1} parent=5 // pred_fallthru
        _
      %p451 = scmp.le.s32.totalorder 2, %s18
      // Predicated region
      $region61: #{tpu_custom_call.1} parent=5 // pred_check
        %p452 = pneg %p451
      $region62: #{tpu_custom_call.1} parent=5 // pred_check_branch
        %454 = sbr.rel (%p452) target = $region64
      $region63: #{tpu_custom_call.1} parent=5 // pred_region
        %s455 = ssub.s32 %s18, 2
        // Predicated region
        $region65: #{tpu_custom_call.1} parent=63 // pred_check
          %p456 = pneg %p155
        $region66: #{tpu_custom_call.1} parent=63 // pred_check_branch
          %458 = sbr.rel (%p456) target = $region68
        $region67: #{tpu_custom_call.1} parent=63 // pred_region
          %s459 = sand.u32 %s140, 1
          %s460 = scalar_lea.sflag [#allocation5], %s459
          %s461 = sand.u32 %s140, 1
          %s462 = smul.addr %s461, 8
          %s463 = scalar_lea.vmem [#allocation10], %s462
          %464 = dma.done %s460, 128
        $region68: #{tpu_custom_call.1} parent=63 // pred_fallthru
          _
      $region64: #{tpu_custom_call.1} parent=5 // pred_fallthru
        _
    $region6: #{tpu_custom_call.1} parent=1 // loop_footer
      %s22 = sadd.s32 1, %s18
    $region7: #{tpu_custom_call.1} parent=1 // loop_footer_branch
      %17 = sbr.rel target = $region3
    $region8: #{tpu_custom_call.1} parent=1 // loop_exit
      _
    %465 = vsyncpa [#allocation4], 1
    %s466 = scalar_lea.sflag [#allocation4], 1
    %467 = vsyncpa %s466, 1
    %468 = vsyncpa [#allocation9], 1
    %469 = vsyncpa [#allocation5], 1
    %s470 = scalar_lea.sflag [#allocation5], 1
    %471 = vsyncpa %s470, 1
    %472 = vsyncpa [#allocation6], 1
    %s473 = scalar_lea.sflag [#allocation6], 1
    %474 = vsyncpa %s473, 1

</llo_original>
